<compile_context>
chip_gen: v5e
topology: v5e:2x2
jax: 0.10.0
libtpu: 0.0.40
codegen_flags: <defaults>
</compile_context>

<pallas_src>
import math

import jax
import jax.numpy as jnp
from jax.experimental import pallas as pl
from jax.experimental.pallas import tpu as pltpu

_INV_SQRT2 = 1.0 / math.sqrt(2.0)


def ffn_kernel(x_ref, w1_ref, b1_ref, w2_ref, b2_ref, o_ref, acc_ref):
    """One (row-tile i, d_ff-chunk k) step of y = gelu(x @ W1 + b1) @ W2 + b2."""
    k = pl.program_id(1)

    @pl.when(k == 0)
    def _init():
        acc_ref[...] = jnp.zeros_like(acc_ref)

    # Linear 1 on this d_ff chunk. Operands stay in their native dtype (bf16
    # takes the fast MXU path); accumulation is f32.
    h = jnp.dot(x_ref[...], w1_ref[...], preferred_element_type=jnp.float32)
    h = h + b1_ref[...].astype(jnp.float32)

    # Exact erf-based GELU (matches the PyTorch reference gelu()); the erf
    # rides the EUP slot and hides under the MXU work.
    g = h * 0.5 * (1.0 + jax.lax.erf(h * _INV_SQRT2))

    # TODO(synk): training-mode dropout omitted (identity at inference); would
    # use pltpu.prng_seed + pltpu.stateful_bernoulli if needed.

    # Linear 2 on this chunk, accumulated in f32 scratch across the d_ff axis.
    acc_ref[...] += jnp.dot(g.astype(w2_ref.dtype), w2_ref[...],
                            preferred_element_type=jnp.float32)

    @pl.when(k == pl.num_programs(1) - 1)
    def _finalize():
        o_ref[...] = (acc_ref[...] + b2_ref[...].astype(jnp.float32)
                      ).astype(o_ref.dtype)


def _round_up(n, m):
    return ((n + m - 1) // m) * m


def _pick_ff_tile(d_ff, target=512):
    """Largest d_ff chunk <= target that is a multiple of 128 and divides d_ff."""
    if d_ff <= target:
        return d_ff
    for cand in range(target, 0, -128):
        if d_ff % cand == 0:
            return cand
    return d_ff  # fall back to full-resident weights


def positionwise_feed_forward(x, w1, b1, w2, b2, *, tm=256, ff_tile=None):
    """x: [B, S, d_model]; w1: [d_model, d_ff] (in,out layout); w2: [d_ff, d_model]."""
    B, S, d_model = x.shape
    d_ff = w1.shape[1]
    M = B * S

    # Row tile: large for MXU utilization, clamped for tiny inputs; rows are
    # zero-padded so M does not have to divide tm (padded rows discarded).
    tm = int(max(8, min(tm, _round_up(M, 8))))
    tm = _round_up(tm, 8)
    Mp = _round_up(M, tm)

    # d_ff reduction chunk (streamed weight tiles).
    if ff_tile is None:
        ff_tile = _pick_ff_tile(d_ff)
    assert d_ff % ff_tile == 0 and (ff_tile % 128 == 0 or ff_tile == d_ff), (
        "ff_tile must divide d_ff and be a multiple of 128 (or the full d_ff)")

    x2 = x.reshape(M, d_model)
    if Mp != M:
        x2 = jnp.pad(x2, ((0, Mp - M), (0, 0)))
    b1_2 = b1.reshape(1, d_ff)
    b2_2 = b2.reshape(1, d_model)

    grid = (Mp // tm, d_ff // ff_tile)

    # Explicit VMEM budget: double-buffered streams + f32 accumulator + headroom.
    ib = jnp.dtype(x.dtype).itemsize
    vmem_bytes = (
        2 * tm * d_model * ib                               # x row tile
        + 2 * d_model * ff_tile * jnp.dtype(w1.dtype).itemsize
        + 2 * ff_tile * jnp.dtype(b1.dtype).itemsize
        + 2 * ff_tile * d_model * jnp.dtype(w2.dtype).itemsize
        + 2 * d_model * jnp.dtype(b2.dtype).itemsize
        + 2 * tm * d_model * ib                             # output row tile
        + tm * d_model * 4)                                 # f32 accumulator
    vmem_limit = int(min(max(int(vmem_bytes * 1.5) + (4 << 20), 32 << 20),
                         64 << 20))

    cost = pl.CostEstimate(
        flops=4 * Mp * d_model * d_ff,            # two matmuls
        transcendentals=Mp * d_ff,                # erf
        bytes_accessed=(2 * Mp * d_model * ib
                        + 2 * d_model * d_ff * ib * grid[0]))

    out = pl.pallas_call(
        ffn_kernel,
        out_shape=jax.ShapeDtypeStruct((Mp, d_model), x.dtype),
        grid_spec=pltpu.PrefetchScalarGridSpec(
            num_scalar_prefetch=0,
            grid=grid,
            in_specs=[
                pl.BlockSpec((tm, d_model), lambda i, k: (i, 0)),       # x rows
                pl.BlockSpec((d_model, ff_tile), lambda i, k: (0, k)),  # W1 chunk
                pl.BlockSpec((1, ff_tile), lambda i, k: (0, k)),        # b1 chunk
                pl.BlockSpec((ff_tile, d_model), lambda i, k: (k, 0)),  # W2 chunk
                pl.BlockSpec((1, d_model), lambda i, k: (0, 0)),        # b2
            ],
            out_specs=pl.BlockSpec((tm, d_model), lambda i, k: (i, 0)),
            scratch_shapes=[pltpu.VMEM((tm, d_model), jnp.float32)],
        ),
        compiler_params=pltpu.CompilerParams(
            dimension_semantics=("parallel", "arbitrary"),
            vmem_limit_bytes=vmem_limit),
        cost_estimate=cost,
    )(x2, w1, b1_2, w2, b2_2)

    return out[:M].reshape(B, S, d_model)


def _reference(x, w1, b1, w2, b2):
    hp = jax.lax.Precision.HIGHEST
    h = jnp.einsum("bsd,df->bsf", x, w1, precision=hp) + b1
    g = h * 0.5 * (1.0 + jax.lax.erf(h * _INV_SQRT2))
    return jnp.einsum("bsf,fd->bsd", g, w2, precision=hp) + b2


if __name__ == "__main__":
    B, S = 2, 20              # M = 40 rows (exercises row padding when tm=16)
    d_model, d_ff = 32, 256

    key = jax.random.PRNGKey(0)
    kx, k1, kb1, k2, kb2 = jax.random.split(key, 5)

    x = jax.random.normal(kx, (B, S, d_model), dtype=jnp.float32)

    # Deterministic parameter init (PyTorch nn.Linear-style uniform bounds).
    bound1 = 1.0 / math.sqrt(d_model)
    bound2 = 1.0 / math.sqrt(d_ff)
    # Stored as (in_dim, out_dim) so the kernel does x @ W (== x @ weight.T in
    # PyTorch where weight is (out, in)).
    w1 = jax.random.uniform(k1, (d_model, d_ff), jnp.float32, -bound1, bound1)
    b1 = jax.random.uniform(kb1, (d_ff,), jnp.float32, -bound1, bound1)
    w2 = jax.random.uniform(k2, (d_ff, d_model), jnp.float32, -bound2, bound2)
    b2 = jax.random.uniform(kb2, (d_model,), jnp.float32, -bound2, bound2)

    y_ref = _reference(x, w1, b1, w2, b2)

    # 1) Default tiling (single row tile, single d_ff chunk at this toy size).
    y0 = jax.block_until_ready(positionwise_feed_forward(x, w1, b1, w2, b2))
    assert y0.shape == (B, S, d_model)
    assert jnp.allclose(y0, y_ref, atol=5e-5, rtol=5e-5), "mismatch (default tiling)"

    # 2) Force multi-tile rows (with padding) + multi-chunk d_ff reduction.
    y1 = jax.block_until_ready(
        positionwise_feed_forward(x, w1, b1, w2, b2, tm=16, ff_tile=128))
    assert jnp.allclose(y1, y_ref, atol=5e-5, rtol=5e-5), "mismatch (chunked path)"

    # 3) bf16 operands take the native bf16 MXU path with f32 accumulation.
    xb, w1b, b1b = x.astype(jnp.bfloat16), w1.astype(jnp.bfloat16), b1.astype(jnp.bfloat16)
    w2b, b2b = w2.astype(jnp.bfloat16), b2.astype(jnp.bfloat16)
    yb = jax.block_until_ready(
        positionwise_feed_forward(xb, w1b, b1b, w2b, b2b, tm=16, ff_tile=128))
    y_ref_b = _reference(xb.astype(jnp.float32), w1b.astype(jnp.float32),
                         b1b.astype(jnp.float32), w2b.astype(jnp.float32),
                         b2b.astype(jnp.float32))
    assert jnp.allclose(yb.astype(jnp.float32), y_ref_b, atol=5e-2, rtol=5e-2), \
        "mismatch (bf16 path)"

    print("KERNEL_OK")
</pallas_src>

<mosaic_0001>
module attributes {stable_mosaic.version = 11 : i64} {
  func.func @ffn_kernel(%arg0: i32, %arg1: i32, %arg2: memref<40x32xf32, #tpu.memory_space<vmem>>, %arg3: memref<32x256xf32, #tpu.memory_space<vmem>>, %arg4: memref<1x256xf32, #tpu.memory_space<vmem>>, %arg5: memref<256x32xf32, #tpu.memory_space<vmem>>, %arg6: memref<1x32xf32, #tpu.memory_space<vmem>>, %arg7: memref<40x32xf32, #tpu.memory_space<vmem>>, %arg8: memref<40x32xf32, #tpu.memory_space<vmem>>) attributes {dimension_semantics = [#tpu.dimension_semantics<parallel>, #tpu.dimension_semantics<arbitrary>], iteration_bounds = array<i64: 1, 1>, scalar_prefetch = 0 : i64, scratch_operands = 1 : i64, tpu.core_type = #tpu.core_type<tc>, window_params = [{transform_indices = @transform_0, window_bounds = array<i64: 40, 32>}, {transform_indices = @transform_1, window_bounds = array<i64: 32, 256>}, {transform_indices = @transform_2, window_bounds = array<i64: 1, 256>}, {transform_indices = @transform_3, window_bounds = array<i64: 256, 32>}, {pipeline_mode = #tpu.pipeline_mode<synchronous>, transform_indices = @transform_4, window_bounds = array<i64: 1, 32>}, {transform_indices = @transform_5, window_bounds = array<i64: 40, 32>}]} {
    %c0_i32 = arith.constant 0 : i32
    %0 = arith.cmpi eq, %arg1, %c0_i32 : i32
    %1 = arith.extui %0 : i1 to i32
    %c0_i32_0 = arith.constant 0 : i32
    %2 = arith.cmpi ne, %1, %c0_i32_0 : i32
    scf.if %2 {
      %cst_18 = arith.constant 0.000000e+00 : f32
      %25 = vector.broadcast %cst_18 : f32 to vector<40x32xf32>
      %c0_19 = arith.constant 0 : index
      %c0_20 = arith.constant 0 : index
      %26 = vector.load %arg8[%c0_19, %c0_20] : memref<40x32xf32, #tpu.memory_space<vmem>>, vector<40x32xf32>
      tpu.vector_store %arg8[%c0_19, %c0_20], %25 {strides = array<i32>} : memref<40x32xf32, #tpu.memory_space<vmem>>, vector<40x32xf32>,
    } else {
    }
    %c0 = arith.constant 0 : index
    %c0_1 = arith.constant 0 : index
    %3 = vector.load %arg2[%c0, %c0_1] : memref<40x32xf32, #tpu.memory_space<vmem>>, vector<40x32xf32>
    %c0_2 = arith.constant 0 : index
    %c0_3 = arith.constant 0 : index
    %4 = vector.load %arg3[%c0_2, %c0_3] : memref<32x256xf32, #tpu.memory_space<vmem>>, vector<32x256xf32>
    %cst = arith.constant dense<0.000000e+00> : vector<40x256xf32>
    %5 = tpu.matmul %3, %4, %cst {dimension_numbers = #tpu.dot_dimension_numbers<[1], [0], [0], [1], [0, 0, 1, 1], [], []>} : vector<40x32xf32>, vector<32x256xf32>, vector<40x256xf32> -> vector<40x256xf32>
    %c0_4 = arith.constant 0 : index
    %c0_5 = arith.constant 0 : index
    %6 = vector.load %arg4[%c0_4, %c0_5] : memref<1x256xf32, #tpu.memory_space<vmem>>, vector<1x256xf32>
    %7 = vector.broadcast %6 : vector<1x256xf32> to vector<40x256xf32>
    %8 = arith.addf %5, %7 : vector<40x256xf32>
    %cst_6 = arith.constant 5.000000e-01 : f32
    %9 = vector.broadcast %cst_6 : f32 to vector<40x256xf32>
    %10 = arith.mulf %8, %9 : vector<40x256xf32>
    %cst_7 = arith.constant 0.707106769 : f32
    %11 = vector.broadcast %cst_7 : f32 to vector<40x256xf32>
    %12 = arith.mulf %8, %11 : vector<40x256xf32>
    %13 = math.erf %12 : vector<40x256xf32>
    %cst_8 = arith.constant 1.000000e+00 : f32
    %14 = vector.broadcast %cst_8 : f32 to vector<40x256xf32>
    %15 = arith.addf %14, %13 : vector<40x256xf32>
    %16 = arith.mulf %10, %15 : vector<40x256xf32>
    %c0_9 = arith.constant 0 : index
    %c0_10 = arith.constant 0 : index
    %17 = vector.load %arg8[%c0_9, %c0_10] : memref<40x32xf32, #tpu.memory_space<vmem>>, vector<40x32xf32>
    %c0_11 = arith.constant 0 : index
    %c0_12 = arith.constant 0 : index
    %18 = vector.load %arg5[%c0_11, %c0_12] : memref<256x32xf32, #tpu.memory_space<vmem>>, vector<256x32xf32>
    %cst_13 = arith.constant dense<0.000000e+00> : vector<40x32xf32>
    %19 = tpu.matmul %16, %18, %cst_13 {dimension_numbers = #tpu.dot_dimension_numbers<[1], [0], [0], [1], [0, 0, 1, 1], [], []>} : vector<40x256xf32>, vector<256x32xf32>, vector<40x32xf32> -> vector<40x32xf32>
    %20 = arith.addf %17, %19 : vector<40x32xf32>
    %c0_14 = arith.constant 0 : index
    %c0_15 = arith.constant 0 : index
    %21 = vector.load %arg8[%c0_14, %c0_15] : memref<40x32xf32, #tpu.memory_space<vmem>>, vector<40x32xf32>
    tpu.vector_store %arg8[%c0_14, %c0_15], %20 {strides = array<i32>} : memref<40x32xf32, #tpu.memory_space<vmem>>, vector<40x32xf32>,
    %c0_i32_16 = arith.constant 0 : i32
    %22 = arith.cmpi eq, %arg1, %c0_i32_16 : i32
    %23 = arith.extui %22 : i1 to i32
    %c0_i32_17 = arith.constant 0 : i32
    %24 = arith.cmpi ne, %23, %c0_i32_17 : i32
    scf.if %24 {
      %c0_18 = arith.constant 0 : index
      %c0_19 = arith.constant 0 : index
      %25 = vector.load %arg8[%c0_18, %c0_19] : memref<40x32xf32, #tpu.memory_space<vmem>>, vector<40x32xf32>
      %c0_20 = arith.constant 0 : index
      %c0_21 = arith.constant 0 : index
      %26 = vector.load %arg6[%c0_20, %c0_21] : memref<1x32xf32, #tpu.memory_space<vmem>>, vector<1x32xf32>
      %27 = vector.broadcast %26 : vector<1x32xf32> to vector<40x32xf32>
      %28 = arith.addf %25, %27 : vector<40x32xf32>
      %c0_22 = arith.constant 0 : index
      %c0_23 = arith.constant 0 : index
      %29 = vector.load %arg7[%c0_22, %c0_23] : memref<40x32xf32, #tpu.memory_space<vmem>>, vector<40x32xf32>
      tpu.vector_store %arg7[%c0_22, %c0_23], %28 {strides = array<i32>} : memref<40x32xf32, #tpu.memory_space<vmem>>, vector<40x32xf32>,
    } else {
    }
    return
  }
  func.func @transform_0(%arg0: i32, %arg1: i32) -> (i32, i32) {
    %c0_i32 = arith.constant 0 : i32
    %c0_i32_0 = arith.constant 0 : i32
    return %arg0, %c0_i32 : i32, i32
  }
  func.func @transform_1(%arg0: i32, %arg1: i32) -> (i32, i32) {
    %c0_i32 = arith.constant 0 : i32
    %c0_i32_0 = arith.constant 0 : i32
    return %c0_i32, %arg1 : i32, i32
  }
  func.func @transform_2(%arg0: i32, %arg1: i32) -> (i32, i32) {
    %c0_i32 = arith.constant 0 : i32
    %c0_i32_0 = arith.constant 0 : i32
    return %c0_i32, %arg1 : i32, i32
  }
  func.func @transform_3(%arg0: i32, %arg1: i32) -> (i32, i32) {
    %c0_i32 = arith.constant 0 : i32
    %c0_i32_0 = arith.constant 0 : i32
    return %arg1, %c0_i32 : i32, i32
  }
  func.func @transform_4(%arg0: i32, %arg1: i32) -> (i32, i32) {
    %c0_i32 = arith.constant 0 : i32
    %c0_i32_0 = arith.constant 0 : i32
    %c0_i32_1 = arith.constant 0 : i32
    return %c0_i32, %c0_i32_0 : i32, i32
  }
  func.func @transform_5(%arg0: i32, %arg1: i32) -> (i32, i32) {
    %c0_i32 = arith.constant 0 : i32
    %c0_i32_0 = arith.constant 0 : i32
    return %arg0, %c0_i32 : i32, i32
  }
}

</mosaic_0001>

<llo_original>
// kernel: tpu_custom_call.1
$region0: #{tpu_custom_call.1}
  #allocation0 [shape = 'u32[]', space=smem, size = 0x4, offset = 0x4, fixed_abs, tag = 'smem constant byte address 0x4 - core index']
  #allocation1 [shape = 'u32[72,128]{1,0:T(1,128)}', space=vmem, size = 0x9000, scoped, tag = 'internal scratch']
  #allocation2 [shape = 'f32[40,32]{1,0:T(8,128)}', space=vmem, size = 0x5000, scoped, tag = 'scratch operand']
  %s0 = inlined_call_operand.vmem [shape: f32[40,32], index: 0, kind: input, shape index: {}]
  %s1 = inlined_call_operand.vmem [shape: f32[32,256], index: 1, kind: input, shape index: {}]
  %s2 = inlined_call_operand.vmem [shape: f32[1,256], index: 2, kind: input, shape index: {}]
  %s3 = inlined_call_operand.vmem [shape: f32[256,32], index: 3, kind: input, shape index: {}]
  %s4 = inlined_call_operand.vmem [shape: f32[1,32], index: 4, kind: input, shape index: {}]
  %s5 = inlined_call_operand.vmem [shape: f32[40,32], index: 5, kind: output, shape index: {}]
  %s6 = sld [smem:[#allocation0]]
  $region38: #{tpu_custom_call.1} parent=0
    _
  %s8 = ssub.s32 1, %s6
  %s9 = scalar_select 0, %s8, %s6
  // Predicated region
  $region2: #{tpu_custom_call.1} parent=0 // pred_check
    _
  $region3: #{tpu_custom_call.1} parent=0 // pred_check_branch
    %11 = sbr.rel (0) target = $region5
  $region4: #{tpu_custom_call.1} parent=0 // pred_region
    _
  $region5: #{tpu_custom_call.1} parent=0 // pred_fallthru
    _
  // Predicated region
  $region6: #{tpu_custom_call.1} parent=0 // pred_check
    _
  $region7: #{tpu_custom_call.1} parent=0 // pred_check_branch
    %13 = sbr.rel (0) target = $region9
  $region8: #{tpu_custom_call.1} parent=0 // pred_region
    _
  $region9: #{tpu_custom_call.1} parent=0 // pred_fallthru
    _
  // Predicated region
  $region10: #{tpu_custom_call.1} parent=0 // pred_check
    _
  $region11: #{tpu_custom_call.1} parent=0 // pred_check_branch
    %15 = sbr.rel (0) target = $region13
  $region12: #{tpu_custom_call.1} parent=0 // pred_region
    _
  $region13: #{tpu_custom_call.1} parent=0 // pred_fallthru
    _
  // Predicated region
  $region14: #{tpu_custom_call.1} parent=0 // pred_check
    _
  $region15: #{tpu_custom_call.1} parent=0 // pred_check_branch
    %17 = sbr.rel (0) target = $region17
  $region16: #{tpu_custom_call.1} parent=0 // pred_region
    _
  $region17: #{tpu_custom_call.1} parent=0 // pred_fallthru
    _
  // Predicated region
  $region18: #{tpu_custom_call.1} parent=0 // pred_check
    _
  $region19: #{tpu_custom_call.1} parent=0 // pred_check_branch
    %19 = sbr.rel (0) target = $region21
  $region20: #{tpu_custom_call.1} parent=0 // pred_region
    _
  $region21: #{tpu_custom_call.1} parent=0 // pred_fallthru
    _
  %p20 = scmp.eq.s32.totalorder 0, 0
  // Predicated region
  $region22: #{tpu_custom_call.1} parent=0 // pred_check
    %p21 = pneg %p20
  $region23: #{tpu_custom_call.1} parent=0 // pred_check_branch
    %23 = sbr.rel (%p21) target = $region25
  $region24: #{tpu_custom_call.1} parent=0 // pred_region
    %vm24 = vcmask 261120
    %25 = vst.msk [vmem:[#allocation2] sm:$0xff] %vm24, 0.0
    %26 = vst.msk [vmem:[#allocation2 + $0x8] sm:$0xff] %vm24, 0.0
    %27 = vst.msk [vmem:[#allocation2 + $0x10] sm:$0xff] %vm24, 0.0
    %28 = vst.msk [vmem:[#allocation2 + $0x18] sm:$0xff] %vm24, 0.0
    %29 = vst.msk [vmem:[#allocation2 + $0x20] sm:$0xff] %vm24, 0.0
  $region25: #{tpu_custom_call.1} parent=0 // pred_fallthru
    _
  %v30 = vld [vmem:[%s0] sm:$0xff]
  %v31 = vld [vmem:[%s0 + $0x8] sm:$0xff]
  %v32 = vld [vmem:[%s0 + $0x10] sm:$0xff]
  %v33 = vld [vmem:[%s0 + $0x18] sm:$0xff]
  %v34 = vld [vmem:[%s0 + $0x20] sm:$0xff]
  %v35 = vld [vmem:[%s1] sm:$0xff]
  %v36 = vld [vmem:[%s1 + $0x8] sm:$0xff]
  %v37 = vld [vmem:[%s1 + $0x10] sm:$0xff]
  %v38 = vld [vmem:[%s1 + $0x18] sm:$0xff]
  %v39 = vld [vmem:[%s1 + $0x20] sm:$0xff]
  %v40 = vld [vmem:[%s1 + $0x28] sm:$0xff]
  %v41 = vld [vmem:[%s1 + $0x30] sm:$0xff]
  %v42 = vld [vmem:[%s1 + $0x38] sm:$0xff]
  %v43 = vld [vmem:[%s2] sm:$0x3]
  %v45 = vperm.slane %v43, 0
  %v46 = vperm.slane %v43, 1
  %vm49 = vcmask 261120
  %v51 = vsel %vm49, %v30, 0
  %v54 = vsel %vm49, %v31, 0
  %v57 = vsel %vm49, %v32, 0
  %v60 = vsel %vm49, %v33, 0
  %v63 = vsel %vm49, %v34, 0
  %65 = vmatpush.msra.mxu0 0.0
  %66 = vmatpush.msra.mxu0 0.0
  %67 = vmatpush.msra.mxu0 0.0
  %68 = vmatpush.msra.mxu0 0.0
  %69 = vmatpush.msra.mxu0 0.0
  %70 = vmatpush.msra.mxu0 0.0
  %71 = vmatpush.msra.mxu0 0.0
  %72 = vmatpush.msra.mxu0 0.0
  %73 = vmatpush.msra.mxu0 0.0
  %74 = vmatpush.msra.mxu0 0.0
  %75 = vmatpush.msra.mxu0 0.0
  %76 = vmatpush.msra.mxu0 0.0
  %77 = vmatpush.msra.mxu0 %v41
  %78 = vmatpush.msra.mxu0 %v39
  %79 = vmatpush.msra.mxu0 %v37
  %80 = vmatpush.msra.mxu0 %v35
  %81 = vmatmul.f32.gmra.mxu0 %v51
  %v82 = vpop.f32.mrf.mxu0
  %v83 = vadd.f32 %v45, %v82
  %84 = vmatmul.f32.gmra.mxu0 %v54
  %v85 = vpop.f32.mrf.mxu0
  %v86 = vadd.f32 %v45, %v85
  %87 = vmatmul.f32.gmra.mxu0 %v57
  %v88 = vpop.f32.mrf.mxu0
  %v89 = vadd.f32 %v45, %v88
  %90 = vmatmul.f32.gmra.mxu0 %v60
  %v91 = vpop.f32.mrf.mxu0
  %v92 = vadd.f32 %v45, %v91
  %93 = vmatmul.f32.gmra.mxu0 %v63
  %v94 = vpop.f32.mrf.mxu0
  %v95 = vadd.f32 %v45, %v94
  %96 = vdwg.mxu0
  %97 = vmatpush.msra.mxu0 0.0
  %98 = vmatpush.msra.mxu0 0.0
  %99 = vmatpush.msra.mxu0 0.0
  %100 = vmatpush.msra.mxu0 0.0
  %101 = vmatpush.msra.mxu0 0.0
  %102 = vmatpush.msra.mxu0 0.0
  %103 = vmatpush.msra.mxu0 0.0
  %104 = vmatpush.msra.mxu0 0.0
  %105 = vmatpush.msra.mxu0 0.0
  %106 = vmatpush.msra.mxu0 0.0
  %107 = vmatpush.msra.mxu0 0.0
  %108 = vmatpush.msra.mxu0 0.0
  %109 = vmatpush.msra.mxu0 %v42
  %110 = vmatpush.msra.mxu0 %v40
  %111 = vmatpush.msra.mxu0 %v38
  %112 = vmatpush.msra.mxu0 %v36
  %113 = vmatmul.f32.gmra.mxu0 %v51
  %v114 = vpop.f32.mrf.mxu0
  %v115 = vadd.f32 %v46, %v114
  %116 = vmatmul.f32.gmra.mxu0 %v54
  %v117 = vpop.f32.mrf.mxu0
  %v118 = vadd.f32 %v46, %v117
  %119 = vmatmul.f32.gmra.mxu0 %v57
  %v120 = vpop.f32.mrf.mxu0
  %v121 = vadd.f32 %v46, %v120
  %122 = vmatmul.f32.gmra.mxu0 %v60
  %v123 = vpop.f32.mrf.mxu0
  %v124 = vadd.f32 %v46, %v123
  %125 = vmatmul.f32.gmra.mxu0 %v63
  %v126 = vpop.f32.mrf.mxu0
  %v127 = vadd.f32 %v46, %v126
  %128 = vdwg.mxu0
  %v129 = vmul.f32 %v83, 0.5
  %v130 = vmul.f32 %v115, 0.5
  %v131 = vmul.f32 %v86, 0.5
  %v132 = vmul.f32 %v118, 0.5
  %v133 = vmul.f32 %v89, 0.5
  %v134 = vmul.f32 %v121, 0.5
  %v135 = vmul.f32 %v92, 0.5
  %v136 = vmul.f32 %v124, 0.5
  %v137 = vmul.f32 %v95, 0.5
  %v138 = vmul.f32 %v127, 0.5
  %v139 = vmul.f32 %v83, 0.70710677
  %v140 = vmul.f32 %v115, 0.70710677
  %v141 = vmul.f32 %v86, 0.70710677
  %v142 = vmul.f32 %v118, 0.70710677
  %v143 = vmul.f32 %v89, 0.70710677
  %v144 = vmul.f32 %v121, 0.70710677
  %v145 = vmul.f32 %v92, 0.70710677
  %v146 = vmul.f32 %v124, 0.70710677
  %v147 = vmul.f32 %v95, 0.70710677
  %v148 = vmul.f32 %v127, 0.70710677
  %v149 = vmul.f32 %v139, %v139
  %v150 = vmin.f32 16.0, %v149
  %v151 = vmul.f32 %v150, 2.1237322e-06
  %v152 = vadd.f32 %v151, 0.00028619796
  %v153 = vmul.f32 %v150, %v152
  %v154 = vadd.f32 %v153, 0.0036580483
  %v155 = vmul.f32 %v150, %v154
  %v156 = vadd.f32 %v155, 0.05243302
  %v157 = vmul.f32 %v150, %v156
  %v158 = vadd.f32 %v157, 0.18741608
  %v159 = vmul.f32 %v150, %v158
  %v160 = vadd.f32 %v159, 1.1283791
  %v161 = vmul.f32 %v139, %v160
  %v162 = vmul.f32 %v150, 3.8918573e-05
  %v163 = vadd.f32 %v162, 0.001143296
  %v164 = vmul.f32 %v150, %v163
  %v165 = vadd.f32 %v164, 0.014752088
  %v166 = vmul.f32 %v150, %v165
  %v167 = vadd.f32 %v166, 0.112945676
  %v168 = vmul.f32 %v150, %v167
  %v169 = vadd.f32 %v168, 0.4994258
  %v170 = vmul.f32 %v150, %v169
  %v171 = vadd.f32 %v170, 1.0
  %v172 = vrcp.pop %v171
  %v173 = vmul.f32 %v171, %v172
  %v174 = vsub.f32 1.0, %v173
  %v175 = vmul.f32 %v172, %v174
  %v176 = vadd.f32 %v172, %v175
  %vm177 = vweird.f32 %v171
  %vm178 = vweird.f32 %v172
  %vm179 = vmor %vm177, %vm178
  %v180 = vsel %vm179, %v172, %v176
  %v181 = vand.u32 2147483647, %v171
  %vm182 = vcmp.eq.f32.partialorder %v181, 8.507059e+37
  %v183 = vand.u32 %v171, 2147483648
  %v184 = vor.u32 1.1754944e-38, %v183
  %v185 = vsel %vm182, %v184, %v180
  %v186 = vmul.f32 %v161, %v185
  %v187 = vmin.f32 %v186, 1.0
  %v188 = vmax.f32 %v187, -1.0
  %v189 = vmul.f32 %v140, %v140
  %v190 = vmin.f32 16.0, %v189
  %v191 = vmul.f32 %v190, 2.1237322e-06
  %v192 = vadd.f32 %v191, 0.00028619796
  %v193 = vmul.f32 %v190, %v192
  %v194 = vadd.f32 %v193, 0.0036580483
  %v195 = vmul.f32 %v190, %v194
  %v196 = vadd.f32 %v195, 0.05243302
  %v197 = vmul.f32 %v190, %v196
  %v198 = vadd.f32 %v197, 0.18741608
  %v199 = vmul.f32 %v190, %v198
  %v200 = vadd.f32 %v199, 1.1283791
  %v201 = vmul.f32 %v140, %v200
  %v202 = vmul.f32 %v190, 3.8918573e-05
  %v203 = vadd.f32 %v202, 0.001143296
  %v204 = vmul.f32 %v190, %v203
  %v205 = vadd.f32 %v204, 0.014752088
  %v206 = vmul.f32 %v190, %v205
  %v207 = vadd.f32 %v206, 0.112945676
  %v208 = vmul.f32 %v190, %v207
  %v209 = vadd.f32 %v208, 0.4994258
  %v210 = vmul.f32 %v190, %v209
  %v211 = vadd.f32 %v210, 1.0
  %v212 = vrcp.pop %v211
  %v213 = vmul.f32 %v211, %v212
  %v214 = vsub.f32 1.0, %v213
  %v215 = vmul.f32 %v212, %v214
  %v216 = vadd.f32 %v212, %v215
  %vm217 = vweird.f32 %v211
  %vm218 = vweird.f32 %v212
  %vm219 = vmor %vm217, %vm218
  %v220 = vsel %vm219, %v212, %v216
  %v221 = vand.u32 2147483647, %v211
  %vm222 = vcmp.eq.f32.partialorder %v221, 8.507059e+37
  %v223 = vand.u32 %v211, 2147483648
  %v224 = vor.u32 1.1754944e-38, %v223
  %v225 = vsel %vm222, %v224, %v220
  %v226 = vmul.f32 %v201, %v225
  %v227 = vmin.f32 %v226, 1.0
  %v228 = vmax.f32 %v227, -1.0
  %v229 = vmul.f32 %v141, %v141
  %v230 = vmin.f32 16.0, %v229
  %v231 = vmul.f32 %v230, 2.1237322e-06
  %v232 = vadd.f32 %v231, 0.00028619796
  %v233 = vmul.f32 %v230, %v232
  %v234 = vadd.f32 %v233, 0.0036580483
  %v235 = vmul.f32 %v230, %v234
  %v236 = vadd.f32 %v235, 0.05243302
  %v237 = vmul.f32 %v230, %v236
  %v238 = vadd.f32 %v237, 0.18741608
  %v239 = vmul.f32 %v230, %v238
  %v240 = vadd.f32 %v239, 1.1283791
  %v241 = vmul.f32 %v141, %v240
  %v242 = vmul.f32 %v230, 3.8918573e-05
  %v243 = vadd.f32 %v242, 0.001143296
  %v244 = vmul.f32 %v230, %v243
  %v245 = vadd.f32 %v244, 0.014752088
  %v246 = vmul.f32 %v230, %v245
  %v247 = vadd.f32 %v246, 0.112945676
  %v248 = vmul.f32 %v230, %v247
  %v249 = vadd.f32 %v248, 0.4994258
  %v250 = vmul.f32 %v230, %v249
  %v251 = vadd.f32 %v250, 1.0
  %v252 = vrcp.pop %v251
  %v253 = vmul.f32 %v251, %v252
  %v254 = vsub.f32 1.0, %v253
  %v255 = vmul.f32 %v252, %v254
  %v256 = vadd.f32 %v252, %v255
  %vm257 = vweird.f32 %v251
  %vm258 = vweird.f32 %v252
  %vm259 = vmor %vm257, %vm258
  %v260 = vsel %vm259, %v252, %v256
  %v261 = vand.u32 2147483647, %v251
  %vm262 = vcmp.eq.f32.partialorder %v261, 8.507059e+37
  %v263 = vand.u32 %v251, 2147483648
  %v264 = vor.u32 1.1754944e-38, %v263
  %v265 = vsel %vm262, %v264, %v260
  %v266 = vmul.f32 %v241, %v265
  %v267 = vmin.f32 %v266, 1.0
  %v268 = vmax.f32 %v267, -1.0
  %v269 = vmul.f32 %v142, %v142
  %v270 = vmin.f32 16.0, %v269
  %v271 = vmul.f32 %v270, 2.1237322e-06
  %v272 = vadd.f32 %v271, 0.00028619796
  %v273 = vmul.f32 %v270, %v272
  %v274 = vadd.f32 %v273, 0.0036580483
  %v275 = vmul.f32 %v270, %v274
  %v276 = vadd.f32 %v275, 0.05243302
  %v277 = vmul.f32 %v270, %v276
  %v278 = vadd.f32 %v277, 0.18741608
  %v279 = vmul.f32 %v270, %v278
  %v280 = vadd.f32 %v279, 1.1283791
  %v281 = vmul.f32 %v142, %v280
  %v282 = vmul.f32 %v270, 3.8918573e-05
  %v283 = vadd.f32 %v282, 0.001143296
  %v284 = vmul.f32 %v270, %v283
  %v285 = vadd.f32 %v284, 0.014752088
  %v286 = vmul.f32 %v270, %v285
  %v287 = vadd.f32 %v286, 0.112945676
  %v288 = vmul.f32 %v270, %v287
  %v289 = vadd.f32 %v288, 0.4994258
  %v290 = vmul.f32 %v270, %v289
  %v291 = vadd.f32 %v290, 1.0
  %v292 = vrcp.pop %v291
  %v293 = vmul.f32 %v291, %v292
  %v294 = vsub.f32 1.0, %v293
  %v295 = vmul.f32 %v292, %v294
  %v296 = vadd.f32 %v292, %v295
  %vm297 = vweird.f32 %v291
  %vm298 = vweird.f32 %v292
  %vm299 = vmor %vm297, %vm298
  %v300 = vsel %vm299, %v292, %v296
  %v301 = vand.u32 2147483647, %v291
  %vm302 = vcmp.eq.f32.partialorder %v301, 8.507059e+37
  %v303 = vand.u32 %v291, 2147483648
  %v304 = vor.u32 1.1754944e-38, %v303
  %v305 = vsel %vm302, %v304, %v300
  %v306 = vmul.f32 %v281, %v305
  %v307 = vmin.f32 %v306, 1.0
  %v308 = vmax.f32 %v307, -1.0
  %v309 = vmul.f32 %v143, %v143
  %v310 = vmin.f32 16.0, %v309
  %v311 = vmul.f32 %v310, 2.1237322e-06
  %v312 = vadd.f32 %v311, 0.00028619796
  %v313 = vmul.f32 %v310, %v312
  %v314 = vadd.f32 %v313, 0.0036580483
  %v315 = vmul.f32 %v310, %v314
  %v316 = vadd.f32 %v315, 0.05243302
  %v317 = vmul.f32 %v310, %v316
  %v318 = vadd.f32 %v317, 0.18741608
  %v319 = vmul.f32 %v310, %v318
  %v320 = vadd.f32 %v319, 1.1283791
  %v321 = vmul.f32 %v143, %v320
  %v322 = vmul.f32 %v310, 3.8918573e-05
  %v323 = vadd.f32 %v322, 0.001143296
  %v324 = vmul.f32 %v310, %v323
  %v325 = vadd.f32 %v324, 0.014752088
  %v326 = vmul.f32 %v310, %v325
  %v327 = vadd.f32 %v326, 0.112945676
  %v328 = vmul.f32 %v310, %v327
  %v329 = vadd.f32 %v328, 0.4994258
  %v330 = vmul.f32 %v310, %v329
  %v331 = vadd.f32 %v330, 1.0
  %v332 = vrcp.pop %v331
  %v333 = vmul.f32 %v331, %v332
  %v334 = vsub.f32 1.0, %v333
  %v335 = vmul.f32 %v332, %v334
  %v336 = vadd.f32 %v332, %v335
  %vm337 = vweird.f32 %v331
  %vm338 = vweird.f32 %v332
  %vm339 = vmor %vm337, %vm338
  %v340 = vsel %vm339, %v332, %v336
  %v341 = vand.u32 2147483647, %v331
  %vm342 = vcmp.eq.f32.partialorder %v341, 8.507059e+37
  %v343 = vand.u32 %v331, 2147483648
  %v344 = vor.u32 1.1754944e-38, %v343
  %v345 = vsel %vm342, %v344, %v340
  %v346 = vmul.f32 %v321, %v345
  %v347 = vmin.f32 %v346, 1.0
  %v348 = vmax.f32 %v347, -1.0
  %v349 = vmul.f32 %v144, %v144
  %v350 = vmin.f32 16.0, %v349
  %v351 = vmul.f32 %v350, 2.1237322e-06
  %v352 = vadd.f32 %v351, 0.00028619796
  %v353 = vmul.f32 %v350, %v352
  %v354 = vadd.f32 %v353, 0.0036580483
  %v355 = vmul.f32 %v350, %v354
  %v356 = vadd.f32 %v355, 0.05243302
  %v357 = vmul.f32 %v350, %v356
  %v358 = vadd.f32 %v357, 0.18741608
  %v359 = vmul.f32 %v350, %v358
  %v360 = vadd.f32 %v359, 1.1283791
  %v361 = vmul.f32 %v144, %v360
  %v362 = vmul.f32 %v350, 3.8918573e-05
  %v363 = vadd.f32 %v362, 0.001143296
  %v364 = vmul.f32 %v350, %v363
  %v365 = vadd.f32 %v364, 0.014752088
  %v366 = vmul.f32 %v350, %v365
  %v367 = vadd.f32 %v366, 0.112945676
  %v368 = vmul.f32 %v350, %v367
  %v369 = vadd.f32 %v368, 0.4994258
  %v370 = vmul.f32 %v350, %v369
  %v371 = vadd.f32 %v370, 1.0
  %v372 = vrcp.pop %v371
  %v373 = vmul.f32 %v371, %v372
  %v374 = vsub.f32 1.0, %v373
  %v375 = vmul.f32 %v372, %v374
  %v376 = vadd.f32 %v372, %v375
  %vm377 = vweird.f32 %v371
  %vm378 = vweird.f32 %v372
  %vm379 = vmor %vm377, %vm378
  %v380 = vsel %vm379, %v372, %v376
  %v381 = vand.u32 2147483647, %v371
  %vm382 = vcmp.eq.f32.partialorder %v381, 8.507059e+37
  %v383 = vand.u32 %v371, 2147483648
  %v384 = vor.u32 1.1754944e-38, %v383
  %v385 = vsel %vm382, %v384, %v380
  %v386 = vmul.f32 %v361, %v385
  %v387 = vmin.f32 %v386, 1.0
  %v388 = vmax.f32 %v387, -1.0
  %v389 = vmul.f32 %v145, %v145
  %v390 = vmin.f32 16.0, %v389
  %v391 = vmul.f32 %v390, 2.1237322e-06
  %v392 = vadd.f32 %v391, 0.00028619796
  %v393 = vmul.f32 %v390, %v392
  %v394 = vadd.f32 %v393, 0.0036580483
  %v395 = vmul.f32 %v390, %v394
  %v396 = vadd.f32 %v395, 0.05243302
  %v397 = vmul.f32 %v390, %v396
  %v398 = vadd.f32 %v397, 0.18741608
  %v399 = vmul.f32 %v390, %v398
  %v400 = vadd.f32 %v399, 1.1283791
  %v401 = vmul.f32 %v145, %v400
  %v402 = vmul.f32 %v390, 3.8918573e-05
  %v403 = vadd.f32 %v402, 0.001143296
  %v404 = vmul.f32 %v390, %v403
  %v405 = vadd.f32 %v404, 0.014752088
  %v406 = vmul.f32 %v390, %v405
  %v407 = vadd.f32 %v406, 0.112945676
  %v408 = vmul.f32 %v390, %v407
  %v409 = vadd.f32 %v408, 0.4994258
  %v410 = vmul.f32 %v390, %v409
  %v411 = vadd.f32 %v410, 1.0
  %v412 = vrcp.pop %v411
  %v413 = vmul.f32 %v411, %v412
  %v414 = vsub.f32 1.0, %v413
  %v415 = vmul.f32 %v412, %v414
  %v416 = vadd.f32 %v412, %v415
  %vm417 = vweird.f32 %v411
  %vm418 = vweird.f32 %v412
  %vm419 = vmor %vm417, %vm418
  %v420 = vsel %vm419, %v412, %v416
  %v421 = vand.u32 2147483647, %v411
  %vm422 = vcmp.eq.f32.partialorder %v421, 8.507059e+37
  %v423 = vand.u32 %v411, 2147483648
  %v424 = vor.u32 1.1754944e-38, %v423
  %v425 = vsel %vm422, %v424, %v420
  %v426 = vmul.f32 %v401, %v425
  %v427 = vmin.f32 %v426, 1.0
  %v428 = vmax.f32 %v427, -1.0
  %v429 = vmul.f32 %v146, %v146
  %v430 = vmin.f32 16.0, %v429
  %v431 = vmul.f32 %v430, 2.1237322e-06
  %v432 = vadd.f32 %v431, 0.00028619796
  %v433 = vmul.f32 %v430, %v432
  %v434 = vadd.f32 %v433, 0.0036580483
  %v435 = vmul.f32 %v430, %v434
  %v436 = vadd.f32 %v435, 0.05243302
  %v437 = vmul.f32 %v430, %v436
  %v438 = vadd.f32 %v437, 0.18741608
  %v439 = vmul.f32 %v430, %v438
  %v440 = vadd.f32 %v439, 1.1283791
  %v441 = vmul.f32 %v146, %v440
  %v442 = vmul.f32 %v430, 3.8918573e-05
  %v443 = vadd.f32 %v442, 0.001143296
  %v444 = vmul.f32 %v430, %v443
  %v445 = vadd.f32 %v444, 0.014752088
  %v446 = vmul.f32 %v430, %v445
  %v447 = vadd.f32 %v446, 0.112945676
  %v448 = vmul.f32 %v430, %v447
  %v449 = vadd.f32 %v448, 0.4994258
  %v450 = vmul.f32 %v430, %v449
  %v451 = vadd.f32 %v450, 1.0
  %v452 = vrcp.pop %v451
  %v453 = vmul.f32 %v451, %v452
  %v454 = vsub.f32 1.0, %v453
  %v455 = vmul.f32 %v452, %v454
  %v456 = vadd.f32 %v452, %v455
  %vm457 = vweird.f32 %v451
  %vm458 = vweird.f32 %v452
  %vm459 = vmor %vm457, %vm458
  %v460 = vsel %vm459, %v452, %v456
  %v461 = vand.u32 2147483647, %v451
  %vm462 = vcmp.eq.f32.partialorder %v461, 8.507059e+37
  %v463 = vand.u32 %v451, 2147483648
  %v464 = vor.u32 1.1754944e-38, %v463
  %v465 = vsel %vm462, %v464, %v460
  %v466 = vmul.f32 %v441, %v465
  %v467 = vmin.f32 %v466, 1.0
  %v468 = vmax.f32 %v467, -1.0
  %v469 = vmul.f32 %v147, %v147
  %v470 = vmin.f32 16.0, %v469
  %v471 = vmul.f32 %v470, 2.1237322e-06
  %v472 = vadd.f32 %v471, 0.00028619796
  %v473 = vmul.f32 %v470, %v472
  %v474 = vadd.f32 %v473, 0.0036580483
  %v475 = vmul.f32 %v470, %v474
  %v476 = vadd.f32 %v475, 0.05243302
  %v477 = vmul.f32 %v470, %v476
  %v478 = vadd.f32 %v477, 0.18741608
  %v479 = vmul.f32 %v470, %v478
  %v480 = vadd.f32 %v479, 1.1283791
  %v481 = vmul.f32 %v147, %v480
  %v482 = vmul.f32 %v470, 3.8918573e-05
  %v483 = vadd.f32 %v482, 0.001143296
  %v484 = vmul.f32 %v470, %v483
  %v485 = vadd.f32 %v484, 0.014752088
  %v486 = vmul.f32 %v470, %v485
  %v487 = vadd.f32 %v486, 0.112945676
  %v488 = vmul.f32 %v470, %v487
  %v489 = vadd.f32 %v488, 0.4994258
  %v490 = vmul.f32 %v470, %v489
  %v491 = vadd.f32 %v490, 1.0
  %v492 = vrcp.pop %v491
  %v493 = vmul.f32 %v491, %v492
  %v494 = vsub.f32 1.0, %v493
  %v495 = vmul.f32 %v492, %v494
  %v496 = vadd.f32 %v492, %v495
  %vm497 = vweird.f32 %v491
  %vm498 = vweird.f32 %v492
  %vm499 = vmor %vm497, %vm498
  %v500 = vsel %vm499, %v492, %v496
  %v501 = vand.u32 2147483647, %v491
  %vm502 = vcmp.eq.f32.partialorder %v501, 8.507059e+37
  %v503 = vand.u32 %v491, 2147483648
  %v504 = vor.u32 1.1754944e-38, %v503
  %v505 = vsel %vm502, %v504, %v500
  %v506 = vmul.f32 %v481, %v505
  %v507 = vmin.f32 %v506, 1.0
  %v508 = vmax.f32 %v507, -1.0
  %v509 = vmul.f32 %v148, %v148
  %v510 = vmin.f32 16.0, %v509
  %v511 = vmul.f32 %v510, 2.1237322e-06
  %v512 = vadd.f32 %v511, 0.00028619796
  %v513 = vmul.f32 %v510, %v512
  %v514 = vadd.f32 %v513, 0.0036580483
  %v515 = vmul.f32 %v510, %v514
  %v516 = vadd.f32 %v515, 0.05243302
  %v517 = vmul.f32 %v510, %v516
  %v518 = vadd.f32 %v517, 0.18741608
  %v519 = vmul.f32 %v510, %v518
  %v520 = vadd.f32 %v519, 1.1283791
  %v521 = vmul.f32 %v148, %v520
  %v522 = vmul.f32 %v510, 3.8918573e-05
  %v523 = vadd.f32 %v522, 0.001143296
  %v524 = vmul.f32 %v510, %v523
  %v525 = vadd.f32 %v524, 0.014752088
  %v526 = vmul.f32 %v510, %v525
  %v527 = vadd.f32 %v526, 0.112945676
  %v528 = vmul.f32 %v510, %v527
  %v529 = vadd.f32 %v528, 0.4994258
  %v530 = vmul.f32 %v510, %v529
  %v531 = vadd.f32 %v530, 1.0
  %v532 = vrcp.pop %v531
  %v533 = vmul.f32 %v531, %v532
  %v534 = vsub.f32 1.0, %v533
  %v535 = vmul.f32 %v532, %v534
  %v536 = vadd.f32 %v532, %v535
  %vm537 = vweird.f32 %v531
  %vm538 = vweird.f32 %v532
  %vm539 = vmor %vm537, %vm538
  %v540 = vsel %vm539, %v532, %v536
  %v541 = vand.u32 2147483647, %v531
  %vm542 = vcmp.eq.f32.partialorder %v541, 8.507059e+37
  %v543 = vand.u32 %v531, 2147483648
  %v544 = vor.u32 1.1754944e-38, %v543
  %v545 = vsel %vm542, %v544, %v540
  %v546 = vmul.f32 %v521, %v545
  %v547 = vmin.f32 %v546, 1.0
  %v548 = vmax.f32 %v547, -1.0
  %v549 = vadd.f32 %v188, 1.0
  %v550 = vadd.f32 %v228, 1.0
  %v551 = vadd.f32 %v268, 1.0
  %v552 = vadd.f32 %v308, 1.0
  %v553 = vadd.f32 %v348, 1.0
  %v554 = vadd.f32 %v388, 1.0
  %v555 = vadd.f32 %v428, 1.0
  %v556 = vadd.f32 %v468, 1.0
  %v557 = vadd.f32 %v508, 1.0
  %v558 = vadd.f32 %v548, 1.0
  %v559 = vmul.f32 %v129, %v549
  %v560 = vmul.f32 %v130, %v550
  %v561 = vmul.f32 %v131, %v551
  %v562 = vmul.f32 %v132, %v552
  %v563 = vmul.f32 %v133, %v553
  %v564 = vmul.f32 %v134, %v554
  %v565 = vmul.f32 %v135, %v555
  %v566 = vmul.f32 %v136, %v556
  %v567 = vmul.f32 %v137, %v557
  %v568 = vmul.f32 %v138, %v558
  %v569 = vld [vmem:[#allocation2] sm:$0xff]
  %v570 = vld [vmem:[#allocation2 + $0x8] sm:$0xff]
  %v571 = vld [vmem:[#allocation2 + $0x10] sm:$0xff]
  %v572 = vld [vmem:[#allocation2 + $0x18] sm:$0xff]
  %v573 = vld [vmem:[#allocation2 + $0x20] sm:$0xff]
  %v574 = vld [vmem:[%s3] sm:$0xff]
  %v575 = vld [vmem:[%s3 + $0x8] sm:$0xff]
  %v576 = vld [vmem:[%s3 + $0x10] sm:$0xff]
  %v577 = vld [vmem:[%s3 + $0x18] sm:$0xff]
  %v578 = vld [vmem:[%s3 + $0x20] sm:$0xff]
  %v579 = vld [vmem:[%s3 + $0x28] sm:$0xff]
  %v580 = vld [vmem:[%s3 + $0x30] sm:$0xff]
  %v581 = vld [vmem:[%s3 + $0x38] sm:$0xff]
  %v582 = vld [vmem:[%s3 + $0x40] sm:$0xff]
  %v583 = vld [vmem:[%s3 + $0x48] sm:$0xff]
  %v584 = vld [vmem:[%s3 + $0x50] sm:$0xff]
  %v585 = vld [vmem:[%s3 + $0x58] sm:$0xff]
  %v586 = vld [vmem:[%s3 + $0x60] sm:$0xff]
  %v587 = vld [vmem:[%s3 + $0x68] sm:$0xff]
  %v588 = vld [vmem:[%s3 + $0x70] sm:$0xff]
  %v589 = vld [vmem:[%s3 + $0x78] sm:$0xff]
  %v590 = vld [vmem:[%s3 + $0x80] sm:$0xff]
  %v591 = vld [vmem:[%s3 + $0x88] sm:$0xff]
  %v592 = vld [vmem:[%s3 + $0x90] sm:$0xff]
  %v593 = vld [vmem:[%s3 + $0x98] sm:$0xff]
  %v594 = vld [vmem:[%s3 + $0xa0] sm:$0xff]
  %v595 = vld [vmem:[%s3 + $0xa8] sm:$0xff]
  %v596 = vld [vmem:[%s3 + $0xb0] sm:$0xff]
  %v597 = vld [vmem:[%s3 + $0xb8] sm:$0xff]
  %v598 = vld [vmem:[%s3 + $0xc0] sm:$0xff]
  %v599 = vld [vmem:[%s3 + $0xc8] sm:$0xff]
  %v600 = vld [vmem:[%s3 + $0xd0] sm:$0xff]
  %v601 = vld [vmem:[%s3 + $0xd8] sm:$0xff]
  %v602 = vld [vmem:[%s3 + $0xe0] sm:$0xff]
  %v603 = vld [vmem:[%s3 + $0xe8] sm:$0xff]
  %v604 = vld [vmem:[%s3 + $0xf0] sm:$0xff]
  %v605 = vld [vmem:[%s3 + $0xf8] sm:$0xff]
  %606 = vmatpush.msra.mxu0 %v589
  %607 = vmatpush.msra.mxu0 %v588
  %608 = vmatpush.msra.mxu0 %v587
  %609 = vmatpush.msra.mxu0 %v586
  %610 = vmatpush.msra.mxu0 %v585
  %611 = vmatpush.msra.mxu0 %v584
  %612 = vmatpush.msra.mxu0 %v583
  %613 = vmatpush.msra.mxu0 %v582
  %614 = vmatpush.msra.mxu0 %v581
  %615 = vmatpush.msra.mxu0 %v580
  %616 = vmatpush.msra.mxu0 %v579
  %617 = vmatpush.msra.mxu0 %v578
  %618 = vmatpush.msra.mxu0 %v577
  %619 = vmatpush.msra.mxu0 %v576
  %620 = vmatpush.msra.mxu0 %v575
  %621 = vmatpush.msra.mxu0 %v574
  %622 = vmatmul.f32.gmra.mxu0 %v559
  %v623 = vpop.f32.mrf.mxu0
  %v624 = vadd.f32 0.0, %v623
  %625 = vmatmul.f32.gmra.mxu0 %v561
  %v626 = vpop.f32.mrf.mxu0
  %v627 = vadd.f32 0.0, %v626
  %628 = vmatmul.f32.gmra.mxu0 %v563
  %v629 = vpop.f32.mrf.mxu0
  %v630 = vadd.f32 0.0, %v629
  %631 = vmatmul.f32.gmra.mxu0 %v565
  %v632 = vpop.f32.mrf.mxu0
  %v633 = vadd.f32 0.0, %v632
  %634 = vmatmul.f32.gmra.mxu0 %v567
  %v635 = vpop.f32.mrf.mxu0
  %v636 = vadd.f32 0.0, %v635
  %637 = vdwg.mxu0
  %638 = vmatpush.msra.mxu0 %v605
  %639 = vmatpush.msra.mxu0 %v604
  %640 = vmatpush.msra.mxu0 %v603
  %641 = vmatpush.msra.mxu0 %v602
  %642 = vmatpush.msra.mxu0 %v601
  %643 = vmatpush.msra.mxu0 %v600
  %644 = vmatpush.msra.mxu0 %v599
  %645 = vmatpush.msra.mxu0 %v598
  %646 = vmatpush.msra.mxu0 %v597
  %647 = vmatpush.msra.mxu0 %v596
  %648 = vmatpush.msra.mxu0 %v595
  %649 = vmatpush.msra.mxu0 %v594
  %650 = vmatpush.msra.mxu0 %v593
  %651 = vmatpush.msra.mxu0 %v592
  %652 = vmatpush.msra.mxu0 %v591
  %653 = vmatpush.msra.mxu0 %v590
  %654 = vmatmul.f32.gmra.mxu0 %v560
  %v655 = vpop.f32.mrf.mxu0
  %v656 = vadd.f32 %v624, %v655
  %657 = vmatmul.f32.gmra.mxu0 %v562
  %v658 = vpop.f32.mrf.mxu0
  %v659 = vadd.f32 %v627, %v658
  %660 = vmatmul.f32.gmra.mxu0 %v564
  %v661 = vpop.f32.mrf.mxu0
  %v662 = vadd.f32 %v630, %v661
  %663 = vmatmul.f32.gmra.mxu0 %v566
  %v664 = vpop.f32.mrf.mxu0
  %v665 = vadd.f32 %v633, %v664
  %666 = vmatmul.f32.gmra.mxu0 %v568
  %v667 = vpop.f32.mrf.mxu0
  %v668 = vadd.f32 %v636, %v667
  %669 = vdwg.mxu0
  %v670 = vadd.f32 %v569, %v656
  %v671 = vadd.f32 %v570, %v659
  %v672 = vadd.f32 %v571, %v662
  %v673 = vadd.f32 %v572, %v665
  %v674 = vadd.f32 %v573, %v668
  %675 = vst.msk [vmem:[#allocation2] sm:$0xff] %vm49, %v670
  %676 = vst.msk [vmem:[#allocation2 + $0x8] sm:$0xff] %vm49, %v671
  %677 = vst.msk [vmem:[#allocation2 + $0x10] sm:$0xff] %vm49, %v672
  %678 = vst.msk [vmem:[#allocation2 + $0x18] sm:$0xff] %vm49, %v673
  %679 = vst.msk [vmem:[#allocation2 + $0x20] sm:$0xff] %vm49, %v674
  // Predicated region
  $region26: #{tpu_custom_call.1} parent=0 // pred_check
    %p680 = pneg %p20
  $region27: #{tpu_custom_call.1} parent=0 // pred_check_branch
    %682 = sbr.rel (%p680) target = $region29
  $region28: #{tpu_custom_call.1} parent=0 // pred_region
    %v683 = vld [vmem:[#allocation2] sm:$0xff]
    %v684 = vld [vmem:[#allocation2 + $0x8] sm:$0xff]
    %v685 = vld [vmem:[#allocation2 + $0x10] sm:$0xff]
    %v686 = vld [vmem:[#allocation2 + $0x18] sm:$0xff]
    %v687 = vld [vmem:[#allocation2 + $0x20] sm:$0xff]
    %v688 = vld [vmem:[%s4] sm:$0x1]
    %v690 = vperm.slane %v688, 0
    %v692 = vadd.f32 %v683, %v690
    %v693 = vadd.f32 %v684, %v690
    %v694 = vadd.f32 %v685, %v690
    %v695 = vadd.f32 %v686, %v690
    %v696 = vadd.f32 %v687, %v690
    %697 = vst.msk [vmem:[%s5] sm:$0xff] %vm49, %v692
    %698 = vst.msk [vmem:[%s5 + $0x8] sm:$0xff] %vm49, %v693
    %699 = vst.msk [vmem:[%s5 + $0x10] sm:$0xff] %vm49, %v694
    %700 = vst.msk [vmem:[%s5 + $0x18] sm:$0xff] %vm49, %v695
    %701 = vst.msk [vmem:[%s5 + $0x20] sm:$0xff] %vm49, %v696
  $region29: #{tpu_custom_call.1} parent=0 // pred_fallthru
    _
  // Predicated region
  $region30: #{tpu_custom_call.1} parent=0 // pred_check
    _
  $region31: #{tpu_custom_call.1} parent=0 // pred_check_branch
    %703 = sbr.rel (0) target = $region33
  $region32: #{tpu_custom_call.1} parent=0 // pred_region
    _
  $region33: #{tpu_custom_call.1} parent=0 // pred_fallthru
    _
  // Predicated region
  $region34: #{tpu_custom_call.1} parent=0 // pred_check
    _
  $region35: #{tpu_custom_call.1} parent=0 // pred_check_branch
    %705 = sbr.rel (0) target = $region37
  $region36: #{tpu_custom_call.1} parent=0 // pred_region
    _
  $region37: #{tpu_custom_call.1} parent=0 // pred_fallthru
    _

</llo_original>
